<compile_context>
chip_gen: v6e
topology: v6e:2x2x1
jax: 0.10.0
libtpu: 0.0.40
codegen_flags: <defaults>
</compile_context>

<pallas_src>
import math

import jax
import jax.numpy as jnp
from jax.experimental import pallas as pl
from jax.experimental.pallas import tpu as pltpu


def _band_weights(w, W):
    """HWIO conv weight (3, 3, Ci, Co) -> (3, W*Ci, W*Co) block-banded matrices.

    M[ky][xin*Ci + ci, x*Co + co] = w[ky, kx, ci, co] with xin = x + kx - 1;
    out-of-range taps (xin < 0 or xin >= W) are absent, which folds the
    width-direction "SAME" zero padding into the matrix.
    """
    kh, kw, Ci, Co = w.shape
    mats = []
    for ky in range(kh):
        m = jnp.zeros((W * Ci, W * Co), w.dtype)
        for kx in range(kw):
            shift = jnp.eye(W, k=1 - kx, dtype=w.dtype)  # xin == x + kx - 1
            m = m + jnp.kron(shift, w[ky, kx])
        mats.append(m)
    return jnp.stack(mats)  # (3, W*Ci, W*Co)


def _resblock_kernel(x_ref, m1_ref, m2_ref, out_ref, xp, hp):
    # x_ref  : (Nb, H, WC)   packed input block (lane dim = W*Cp, 128-multiple)
    # m1_ref : (3, WC, WC)   banded conv1 weights (MXU dtype, bf16 by default)
    # m2_ref : (3, WC, WC)   banded conv2 weights
    # out_ref: (Nb, H, WC)
    # xp, hp : VMEM scratch (Nb*(H+2), WC): per-batch row-padded activations
    Nb, H, WC = x_ref.shape
    Hp = H + 2
    M = Nb * Hp - 2  # fused matmul M dim (2 junk rows per interior batch boundary)

    # ---- stage the input into the row-padded scratch (border rows re-zeroed
    # every step: cheap, and megacore-safe for persistent scratch) ----
    zx = jnp.zeros((1, WC), xp.dtype)
    for b in range(Nb):
        base = b * Hp
        xp[base:base + 1, :] = zx
        xp[base + 1:base + 1 + H, :] = x_ref[b].astype(xp.dtype)
        xp[base + H + 1:base + H + 2, :] = zx

    # ---- conv1: 3 wide MXU matmuls, one per kernel row ----
    acc1 = jnp.zeros((M, WC), jnp.float32)
    for ky in range(3):
        lhs = xp[ky:ky + M, :].astype(m1_ref.dtype)  # no-op cast when dtypes match
        acc1 = acc1 + jnp.dot(lhs, m1_ref[ky], preferred_element_type=jnp.float32)

    # LeakyReLU(negative_slope=0.1)
    act = jnp.where(acc1 > 0, acc1, 0.1 * acc1).astype(hp.dtype)

    # ---- stage the intermediate; junk rows land on pad rows -> re-zero after ----
    hp[1:M + 1, :] = act
    zh = jnp.zeros((1, WC), hp.dtype)
    for b in range(Nb):
        base = b * Hp
        hp[base:base + 1, :] = zh
        hp[base + H + 1:base + H + 2, :] = zh

    # ---- conv2 ----
    acc2 = jnp.zeros((M, WC), jnp.float32)
    for ky in range(3):
        lhs = hp[ky:ky + M, :].astype(m2_ref.dtype)
        acc2 = acc2 + jnp.dot(lhs, m2_ref[ky], preferred_element_type=jnp.float32)

    # ---- residual add (f32, re-read from x_ref here to bound its live range) ----
    for b in range(Nb):
        base = b * Hp
        y = acc2[base:base + H, :] + x_ref[b].astype(jnp.float32)
        out_ref[b] = y.astype(out_ref.dtype)


def resblock(x, w1, w2, *, mxu_dtype=jnp.bfloat16, interim_dtype=jnp.bfloat16,
             batch_block=None):
    """ResBlock forward.

    x : (N, H, W, Cin) NHWC activations (f32).
    w1: (3, 3, Cin, Cm) HWIO conv1 weight (no bias).
    w2: (3, 3, Cm, Cm)  HWIO conv2 weight (no bias).
    mxu_dtype    : matmul-operand dtype (default bf16; f32 accumulation always).
    interim_dtype: dtype of the conv1->conv2 intermediate scratch.
    batch_block  : batch items fused per grid step (default: auto, ~256 M rows).
    """
    N, H, W, Cin = x.shape
    kh, kw, _, Cm = w1.shape
    assert (kh, kw) == (3, 3) and w2.shape == (3, 3, Cm, Cm)
    assert Cin == Cm, "residual add requires in_channels == interim_channels"

    # Lane-dense layout: pad channels so the packed lane width W*Cp is a
    # multiple of 128 (dense unmasked vst, full MXU columns).  Padded channels
    # carry exact zeros through both convs and the residual.
    cmult = 128 // math.gcd(W, 128)
    Cp = -(-Cin // cmult) * cmult
    if Cp > 4 * Cin:
        Cp = Cin  # padding blow-up too large; fall back to native lane width
    if Cp != Cin:
        x = jnp.pad(x, ((0, 0), (0, 0), (0, 0), (0, Cp - Cin)))
        w1 = jnp.pad(w1, ((0, 0), (0, 0), (0, Cp - Cin), (0, Cp - Cm)))
        w2 = jnp.pad(w2, ((0, 0), (0, 0), (0, Cp - Cm), (0, Cp - Cm)))

    WC = W * Cp
    m1 = _band_weights(w1, W).astype(mxu_dtype)  # (3, WC, WC)
    m2 = _band_weights(w2, W).astype(mxu_dtype)  # (3, WC, WC)

    # Minor-dim merge (W, Cp) -> W*Cp: a free relabel, no data movement.
    x_packed = x.reshape(N, H, WC)

    # Fold Nb batch items into the matmul M dimension (target ~256 rows/step).
    if batch_block is None:
        nb_max = max(1, 256 // (H + 2))
        Nb = max(d for d in range(1, N + 1) if N % d == 0 and d <= nb_max)
    else:
        Nb = batch_block
    assert N % Nb == 0

    out = pl.pallas_call(
        _resblock_kernel,
        out_shape=jax.ShapeDtypeStruct((N, H, WC), x.dtype),
        grid=(N // Nb,),
        in_specs=[
            pl.BlockSpec((Nb, H, WC), lambda i: (i, 0, 0)),
            pl.BlockSpec((3, WC, WC), lambda i: (0, 0, 0)),
            pl.BlockSpec((3, WC, WC), lambda i: (0, 0, 0)),
        ],
        out_specs=pl.BlockSpec((Nb, H, WC), lambda i: (i, 0, 0)),
        scratch_shapes=[
            pltpu.VMEM((Nb * (H + 2), WC), mxu_dtype),     # xp: MXU-operand dtype
            pltpu.VMEM((Nb * (H + 2), WC), interim_dtype),  # hp
        ],
        compiler_params=pltpu.CompilerParams(
            dimension_semantics=("parallel",),
            # stays within v7x's 64 MiB physical VMEM while raising the scoped default
            vmem_limit_bytes=48 * 1024 * 1024,
        ),
    )(x_packed, m1, m2)

    out = out.reshape(N, H, W, Cp)
    if Cp != Cm:
        out = out[..., :Cm]
    return out


if __name__ == "__main__":
    # in_channels == interim_channels == 4 (required by the residual add)
    N, H, W, C = 2, 16, 16, 4
    key = jax.random.PRNGKey(0)
    k1, k2, k3 = jax.random.split(key, 3)

    x = jax.random.normal(k1, (N, H, W, C), dtype=jnp.float32)
    # deterministic synthetic weights (kaiming-ish scale), HWIO layout
    w1 = jax.random.normal(k2, (3, 3, C, C), dtype=jnp.float32) * 0.1
    w2 = jax.random.normal(k3, (3, 3, C, C), dtype=jnp.float32) * 0.1

    # pure-JAX reference
    dn = jax.lax.conv_dimension_numbers(x.shape, w1.shape, ("NHWC", "HWIO", "NHWC"))
    h = jax.lax.conv_general_dilated(x, w1, (1, 1), "SAME", dimension_numbers=dn)
    h = jnp.where(h > 0, h, 0.1 * h)
    ref = jax.lax.conv_general_dilated(h, w2, (1, 1), "SAME", dimension_numbers=dn) + x

    # default fast path: bf16 MXU operands + bf16 interim, f32 accumulation
    out = jax.block_until_ready(resblock(x, w1, w2))
    assert out.shape == (N, H, W, C)
    assert jnp.allclose(out, ref, atol=5e-2, rtol=5e-2), "bf16 path mismatch vs reference"

    # exactness check on the f32-operand path
    out_f32 = jax.block_until_ready(
        resblock(x, w1, w2, mxu_dtype=jnp.float32, interim_dtype=jnp.float32))
    assert jnp.allclose(out_f32, ref, atol=1e-4, rtol=1e-4), "f32 path mismatch vs reference"

    print("KERNEL_OK")
</pallas_src>

<mosaic_0001>
module attributes {stable_mosaic.version = 11 : i64} {
  func.func @_resblock_kernel(%arg0: i32, %arg1: memref<2x16x128xf32, #tpu.memory_space<vmem>>, %arg2: memref<3x128x128xbf16, #tpu.memory_space<vmem>>, %arg3: memref<3x128x128xbf16, #tpu.memory_space<vmem>>, %arg4: memref<2x16x128xf32, #tpu.memory_space<vmem>>, %arg5: memref<36x128xbf16, #tpu.memory_space<vmem>>, %arg6: memref<36x128xbf16, #tpu.memory_space<vmem>>) attributes {dimension_semantics = [#tpu.dimension_semantics<parallel>], iteration_bounds = array<i64: 1>, scalar_prefetch = 0 : i64, scratch_operands = 2 : i64, tpu.core_type = #tpu.core_type<tc>, window_params = [{transform_indices = @transform_0, window_bounds = array<i64: 2, 16, 128>}, {pipeline_mode = #tpu.pipeline_mode<synchronous>, transform_indices = @transform_1, window_bounds = array<i64: 3, 128, 128>}, {pipeline_mode = #tpu.pipeline_mode<synchronous>, transform_indices = @transform_2, window_bounds = array<i64: 3, 128, 128>}, {transform_indices = @transform_3, window_bounds = array<i64: 2, 16, 128>}]} {
    %cst = arith.constant 0.000000e+00 : bf16
    %0 = vector.broadcast %cst : bf16 to vector<1x128xbf16>
    %c0 = arith.constant 0 : index
    %c0_0 = arith.constant 0 : index
    %1 = vector.load %arg5[%c0, %c0_0] : memref<36x128xbf16, #tpu.memory_space<vmem>>, vector<1x128xbf16>
    tpu.vector_store %arg5[%c0, %c0_0], %0 {strides = array<i32>} : memref<36x128xbf16, #tpu.memory_space<vmem>>, vector<1x128xbf16>,
    %c0_1 = arith.constant 0 : index
    %c0_2 = arith.constant 0 : index
    %c0_3 = arith.constant 0 : index
    %2 = vector.load %arg1[%c0_1, %c0_2, %c0_3] : memref<2x16x128xf32, #tpu.memory_space<vmem>>, vector<1x16x128xf32>
    %3 = vector.shape_cast %2 : vector<1x16x128xf32> to vector<16x128xf32>
    %4 = arith.truncf %3 : vector<16x128xf32> to vector<16x128xbf16>
    %c1 = arith.constant 1 : index
    %c0_4 = arith.constant 0 : index
    %5 = vector.load %arg5[%c1, %c0_4] : memref<36x128xbf16, #tpu.memory_space<vmem>>, vector<16x128xbf16>
    tpu.vector_store %arg5[%c1, %c0_4], %4 {strides = array<i32>} : memref<36x128xbf16, #tpu.memory_space<vmem>>, vector<16x128xbf16>,
    %c17 = arith.constant 17 : index
    %c0_5 = arith.constant 0 : index
    %6 = vector.load %arg5[%c17, %c0_5] : memref<36x128xbf16, #tpu.memory_space<vmem>>, vector<1x128xbf16>
    tpu.vector_store %arg5[%c17, %c0_5], %0 {strides = array<i32>} : memref<36x128xbf16, #tpu.memory_space<vmem>>, vector<1x128xbf16>,
    %c18 = arith.constant 18 : index
    %c0_6 = arith.constant 0 : index
    %7 = vector.load %arg5[%c18, %c0_6] : memref<36x128xbf16, #tpu.memory_space<vmem>>, vector<1x128xbf16>
    tpu.vector_store %arg5[%c18, %c0_6], %0 {strides = array<i32>} : memref<36x128xbf16, #tpu.memory_space<vmem>>, vector<1x128xbf16>,
    %c1_7 = arith.constant 1 : index
    %c0_8 = arith.constant 0 : index
    %c0_9 = arith.constant 0 : index
    %8 = vector.load %arg1[%c1_7, %c0_8, %c0_9] : memref<2x16x128xf32, #tpu.memory_space<vmem>>, vector<1x16x128xf32>
    %9 = vector.shape_cast %8 : vector<1x16x128xf32> to vector<16x128xf32>
    %10 = arith.truncf %9 : vector<16x128xf32> to vector<16x128xbf16>
    %c19 = arith.constant 19 : index
    %c0_10 = arith.constant 0 : index
    %11 = vector.load %arg5[%c19, %c0_10] : memref<36x128xbf16, #tpu.memory_space<vmem>>, vector<16x128xbf16>
    tpu.vector_store %arg5[%c19, %c0_10], %10 {strides = array<i32>} : memref<36x128xbf16, #tpu.memory_space<vmem>>, vector<16x128xbf16>,
    %c35 = arith.constant 35 : index
    %c0_11 = arith.constant 0 : index
    %12 = vector.load %arg5[%c35, %c0_11] : memref<36x128xbf16, #tpu.memory_space<vmem>>, vector<1x128xbf16>
    tpu.vector_store %arg5[%c35, %c0_11], %0 {strides = array<i32>} : memref<36x128xbf16, #tpu.memory_space<vmem>>, vector<1x128xbf16>,
    %cst_12 = arith.constant 0.000000e+00 : f32
    %13 = vector.broadcast %cst_12 : f32 to vector<34x128xf32>
    %c0_13 = arith.constant 0 : index
    %c0_14 = arith.constant 0 : index
    %14 = vector.load %arg5[%c0_13, %c0_14] : memref<36x128xbf16, #tpu.memory_space<vmem>>, vector<34x128xbf16>
    %c0_15 = arith.constant 0 : index
    %c0_16 = arith.constant 0 : index
    %c0_17 = arith.constant 0 : index
    %15 = vector.load %arg2[%c0_15, %c0_16, %c0_17] : memref<3x128x128xbf16, #tpu.memory_space<vmem>>, vector<1x128x128xbf16>
    %16 = vector.shape_cast %15 : vector<1x128x128xbf16> to vector<128x128xbf16>
    %cst_18 = arith.constant dense<0.000000e+00> : vector<34x128xf32>
    %17 = tpu.matmul %14, %16, %cst_18 {dimension_numbers = #tpu.dot_dimension_numbers<[1], [0], [0], [1], [0, 0, 1, 1], [], []>} : vector<34x128xbf16>, vector<128x128xbf16>, vector<34x128xf32> -> vector<34x128xf32>
    %18 = arith.addf %13, %17 : vector<34x128xf32>
    %c1_19 = arith.constant 1 : index
    %c0_20 = arith.constant 0 : index
    %19 = vector.load %arg5[%c1_19, %c0_20] : memref<36x128xbf16, #tpu.memory_space<vmem>>, vector<34x128xbf16>
    %c1_21 = arith.constant 1 : index
    %c0_22 = arith.constant 0 : index
    %c0_23 = arith.constant 0 : index
    %20 = vector.load %arg2[%c1_21, %c0_22, %c0_23] : memref<3x128x128xbf16, #tpu.memory_space<vmem>>, vector<1x128x128xbf16>
    %21 = vector.shape_cast %20 : vector<1x128x128xbf16> to vector<128x128xbf16>
    %cst_24 = arith.constant dense<0.000000e+00> : vector<34x128xf32>
    %22 = tpu.matmul %19, %21, %cst_24 {dimension_numbers = #tpu.dot_dimension_numbers<[1], [0], [0], [1], [0, 0, 1, 1], [], []>} : vector<34x128xbf16>, vector<128x128xbf16>, vector<34x128xf32> -> vector<34x128xf32>
    %23 = arith.addf %18, %22 : vector<34x128xf32>
    %c2 = arith.constant 2 : index
    %c0_25 = arith.constant 0 : index
    %24 = vector.load %arg5[%c2, %c0_25] : memref<36x128xbf16, #tpu.memory_space<vmem>>, vector<34x128xbf16>
    %c2_26 = arith.constant 2 : index
    %c0_27 = arith.constant 0 : index
    %c0_28 = arith.constant 0 : index
    %25 = vector.load %arg2[%c2_26, %c0_27, %c0_28] : memref<3x128x128xbf16, #tpu.memory_space<vmem>>, vector<1x128x128xbf16>
    %26 = vector.shape_cast %25 : vector<1x128x128xbf16> to vector<128x128xbf16>
    %cst_29 = arith.constant dense<0.000000e+00> : vector<34x128xf32>
    %27 = tpu.matmul %24, %26, %cst_29 {dimension_numbers = #tpu.dot_dimension_numbers<[1], [0], [0], [1], [0, 0, 1, 1], [], []>} : vector<34x128xbf16>, vector<128x128xbf16>, vector<34x128xf32> -> vector<34x128xf32>
    %28 = arith.addf %23, %27 : vector<34x128xf32>
    %cst_30 = arith.constant 0.000000e+00 : f32
    %29 = vector.broadcast %cst_30 : f32 to vector<34x128xf32>
    %30 = arith.cmpf ogt, %28, %29 : vector<34x128xf32>
    %cst_31 = arith.constant 1.000000e-01 : f32
    %31 = vector.broadcast %cst_31 : f32 to vector<34x128xf32>
    %32 = arith.mulf %31, %28 : vector<34x128xf32>
    %33 = arith.select %30, %28, %32 : vector<34x128xi1>, vector<34x128xf32>
    %34 = arith.truncf %33 : vector<34x128xf32> to vector<34x128xbf16>
    %c1_32 = arith.constant 1 : index
    %c0_33 = arith.constant 0 : index
    %35 = vector.load %arg6[%c1_32, %c0_33] : memref<36x128xbf16, #tpu.memory_space<vmem>>, vector<34x128xbf16>
    tpu.vector_store %arg6[%c1_32, %c0_33], %34 {strides = array<i32>} : memref<36x128xbf16, #tpu.memory_space<vmem>>, vector<34x128xbf16>,
    %cst_34 = arith.constant 0.000000e+00 : bf16
    %36 = vector.broadcast %cst_34 : bf16 to vector<1x128xbf16>
    %c0_35 = arith.constant 0 : index
    %c0_36 = arith.constant 0 : index
    %37 = vector.load %arg6[%c0_35, %c0_36] : memref<36x128xbf16, #tpu.memory_space<vmem>>, vector<1x128xbf16>
    tpu.vector_store %arg6[%c0_35, %c0_36], %36 {strides = array<i32>} : memref<36x128xbf16, #tpu.memory_space<vmem>>, vector<1x128xbf16>,
    %c17_37 = arith.constant 17 : index
    %c0_38 = arith.constant 0 : index
    %38 = vector.load %arg6[%c17_37, %c0_38] : memref<36x128xbf16, #tpu.memory_space<vmem>>, vector<1x128xbf16>
    tpu.vector_store %arg6[%c17_37, %c0_38], %36 {strides = array<i32>} : memref<36x128xbf16, #tpu.memory_space<vmem>>, vector<1x128xbf16>,
    %c18_39 = arith.constant 18 : index
    %c0_40 = arith.constant 0 : index
    %39 = vector.load %arg6[%c18_39, %c0_40] : memref<36x128xbf16, #tpu.memory_space<vmem>>, vector<1x128xbf16>
    tpu.vector_store %arg6[%c18_39, %c0_40], %36 {strides = array<i32>} : memref<36x128xbf16, #tpu.memory_space<vmem>>, vector<1x128xbf16>,
    %c35_41 = arith.constant 35 : index
    %c0_42 = arith.constant 0 : index
    %40 = vector.load %arg6[%c35_41, %c0_42] : memref<36x128xbf16, #tpu.memory_space<vmem>>, vector<1x128xbf16>
    tpu.vector_store %arg6[%c35_41, %c0_42], %36 {strides = array<i32>} : memref<36x128xbf16, #tpu.memory_space<vmem>>, vector<1x128xbf16>,
    %cst_43 = arith.constant 0.000000e+00 : f32
    %41 = vector.broadcast %cst_43 : f32 to vector<34x128xf32>
    %c0_44 = arith.constant 0 : index
    %c0_45 = arith.constant 0 : index
    %42 = vector.load %arg6[%c0_44, %c0_45] : memref<36x128xbf16, #tpu.memory_space<vmem>>, vector<34x128xbf16>
    %c0_46 = arith.constant 0 : index
    %c0_47 = arith.constant 0 : index
    %c0_48 = arith.constant 0 : index
    %43 = vector.load %arg3[%c0_46, %c0_47, %c0_48] : memref<3x128x128xbf16, #tpu.memory_space<vmem>>, vector<1x128x128xbf16>
    %44 = vector.shape_cast %43 : vector<1x128x128xbf16> to vector<128x128xbf16>
    %cst_49 = arith.constant dense<0.000000e+00> : vector<34x128xf32>
    %45 = tpu.matmul %42, %44, %cst_49 {dimension_numbers = #tpu.dot_dimension_numbers<[1], [0], [0], [1], [0, 0, 1, 1], [], []>} : vector<34x128xbf16>, vector<128x128xbf16>, vector<34x128xf32> -> vector<34x128xf32>
    %46 = arith.addf %41, %45 : vector<34x128xf32>
    %c1_50 = arith.constant 1 : index
    %c0_51 = arith.constant 0 : index
    %47 = vector.load %arg6[%c1_50, %c0_51] : memref<36x128xbf16, #tpu.memory_space<vmem>>, vector<34x128xbf16>
    %c1_52 = arith.constant 1 : index
    %c0_53 = arith.constant 0 : index
    %c0_54 = arith.constant 0 : index
    %48 = vector.load %arg3[%c1_52, %c0_53, %c0_54] : memref<3x128x128xbf16, #tpu.memory_space<vmem>>, vector<1x128x128xbf16>
    %49 = vector.shape_cast %48 : vector<1x128x128xbf16> to vector<128x128xbf16>
    %cst_55 = arith.constant dense<0.000000e+00> : vector<34x128xf32>
    %50 = tpu.matmul %47, %49, %cst_55 {dimension_numbers = #tpu.dot_dimension_numbers<[1], [0], [0], [1], [0, 0, 1, 1], [], []>} : vector<34x128xbf16>, vector<128x128xbf16>, vector<34x128xf32> -> vector<34x128xf32>
    %51 = arith.addf %46, %50 : vector<34x128xf32>
    %c2_56 = arith.constant 2 : index
    %c0_57 = arith.constant 0 : index
    %52 = vector.load %arg6[%c2_56, %c0_57] : memref<36x128xbf16, #tpu.memory_space<vmem>>, vector<34x128xbf16>
    %c2_58 = arith.constant 2 : index
    %c0_59 = arith.constant 0 : index
    %c0_60 = arith.constant 0 : index
    %53 = vector.load %arg3[%c2_58, %c0_59, %c0_60] : memref<3x128x128xbf16, #tpu.memory_space<vmem>>, vector<1x128x128xbf16>
    %54 = vector.shape_cast %53 : vector<1x128x128xbf16> to vector<128x128xbf16>
    %cst_61 = arith.constant dense<0.000000e+00> : vector<34x128xf32>
    %55 = tpu.matmul %52, %54, %cst_61 {dimension_numbers = #tpu.dot_dimension_numbers<[1], [0], [0], [1], [0, 0, 1, 1], [], []>} : vector<34x128xbf16>, vector<128x128xbf16>, vector<34x128xf32> -> vector<34x128xf32>
    %56 = arith.addf %51, %55 : vector<34x128xf32>
    %57 = vector.extract_strided_slice %56 {offsets = [0, 0], sizes = [16, 128], strides = [1, 1]} : vector<34x128xf32> to vector<16x128xf32>
    %c0_62 = arith.constant 0 : index
    %c0_63 = arith.constant 0 : index
    %c0_64 = arith.constant 0 : index
    %58 = vector.load %arg1[%c0_62, %c0_63, %c0_64] : memref<2x16x128xf32, #tpu.memory_space<vmem>>, vector<1x16x128xf32>
    %59 = vector.shape_cast %58 : vector<1x16x128xf32> to vector<16x128xf32>
    %60 = arith.addf %57, %59 : vector<16x128xf32>
    %c0_65 = arith.constant 0 : index
    %c0_66 = arith.constant 0 : index
    %c0_67 = arith.constant 0 : index
    %61 = vector.load %arg4[%c0_65, %c0_66, %c0_67] : memref<2x16x128xf32, #tpu.memory_space<vmem>>, vector<1x16x128xf32>
    %62 = vector.shape_cast %61 : vector<1x16x128xf32> to vector<16x128xf32>
    %63 = vector.shape_cast %60 : vector<16x128xf32> to vector<1x16x128xf32>
    tpu.vector_store %arg4[%c0_65, %c0_66, %c0_67], %63 {strides = array<i32>} : memref<2x16x128xf32, #tpu.memory_space<vmem>>, vector<1x16x128xf32>,
    %64 = vector.extract_strided_slice %56 {offsets = [18, 0], sizes = [16, 128], strides = [1, 1]} : vector<34x128xf32> to vector<16x128xf32>
    %c1_68 = arith.constant 1 : index
    %c0_69 = arith.constant 0 : index
    %c0_70 = arith.constant 0 : index
    %65 = vector.load %arg1[%c1_68, %c0_69, %c0_70] : memref<2x16x128xf32, #tpu.memory_space<vmem>>, vector<1x16x128xf32>
    %66 = vector.shape_cast %65 : vector<1x16x128xf32> to vector<16x128xf32>
    %67 = arith.addf %64, %66 : vector<16x128xf32>
    %c1_71 = arith.constant 1 : index
    %c0_72 = arith.constant 0 : index
    %c0_73 = arith.constant 0 : index
    %68 = vector.load %arg4[%c1_71, %c0_72, %c0_73] : memref<2x16x128xf32, #tpu.memory_space<vmem>>, vector<1x16x128xf32>
    %69 = vector.shape_cast %68 : vector<1x16x128xf32> to vector<16x128xf32>
    %70 = vector.shape_cast %67 : vector<16x128xf32> to vector<1x16x128xf32>
    tpu.vector_store %arg4[%c1_71, %c0_72, %c0_73], %70 {strides = array<i32>} : memref<2x16x128xf32, #tpu.memory_space<vmem>>, vector<1x16x128xf32>,
    return
  }
  func.func @transform_0(%arg0: i32) -> (i32, i32, i32) {
    %c0_i32 = arith.constant 0 : i32
    %c0_i32_0 = arith.constant 0 : i32
    %c0_i32_1 = arith.constant 0 : i32
    return %arg0, %c0_i32, %c0_i32_0 : i32, i32, i32
  }
  func.func @transform_1(%arg0: i32) -> (i32, i32, i32) {
    %c0_i32 = arith.constant 0 : i32
    %c0_i32_0 = arith.constant 0 : i32
    %c0_i32_1 = arith.constant 0 : i32
    %c0_i32_2 = arith.constant 0 : i32
    return %c0_i32, %c0_i32_0, %c0_i32_1 : i32, i32, i32
  }
  func.func @transform_2(%arg0: i32) -> (i32, i32, i32) {
    %c0_i32 = arith.constant 0 : i32
    %c0_i32_0 = arith.constant 0 : i32
    %c0_i32_1 = arith.constant 0 : i32
    %c0_i32_2 = arith.constant 0 : i32
    return %c0_i32, %c0_i32_0, %c0_i32_1 : i32, i32, i32
  }
  func.func @transform_3(%arg0: i32) -> (i32, i32, i32) {
    %c0_i32 = arith.constant 0 : i32
    %c0_i32_0 = arith.constant 0 : i32
    %c0_i32_1 = arith.constant 0 : i32
    return %arg0, %c0_i32, %c0_i32_0 : i32, i32, i32
  }
}

</mosaic_0001>

<llo_original>
// kernel: tpu_custom_call.1
$region0: #{tpu_custom_call.1}
  #allocation0 [shape = 'u32[]', space=smem, size = 0x4, offset = 0x4, fixed_abs, tag = 'smem constant byte address 0x4 - core index']
  #allocation1 [shape = 'u32[144,128]{1,0:T(1,128)}', space=vmem, size = 0x12000, scoped, tag = 'internal scratch']
  #allocation2 [shape = 'bf16[36,128]{1,0:T(8,128)(2,1)}', space=vmem, size = 0x2800, scoped, tag = 'scratch operand']
  #allocation3 [shape = 'bf16[36,128]{1,0:T(8,128)(2,1)}', space=vmem, size = 0x2800, scoped, tag = 'scratch operand']
  %s0 = inlined_call_operand.hbm [shape: f32[2,16,128], index: 0, kind: input, shape index: {}]
  %s1 = inlined_call_operand.hbm [shape: bf16[3,128,128], index: 1, kind: input, shape index: {}]
  %s2 = inlined_call_operand.hbm [shape: bf16[3,128,128], index: 2, kind: input, shape index: {}]
  %s3 = inlined_call_operand.hbm [shape: f32[2,16,128], index: 3, kind: output, shape index: {}]
  %s4 = sld [smem:[#allocation0]]
  $region34: #{tpu_custom_call.1} parent=0
    _
  %s6 = ssub.s32 1, %s4
  %s7 = scalar_select 0, %s6, %s4
  $region1: #{tpu_custom_call.1} parent=0
    #allocation4 [shape = 'u8[16384]{0}', space=vmem, size = 0x4000, scoped, tag = 'input window, operand 0, single buffered']
    #allocation5 [shape = 's32[1]{0}', space=sflag, size = 0x4, scoped, tag = 'scoped memory for tpu_custom_call.1']
    #allocation6 [shape = 's32[1]{0}', space=sflag, size = 0x4, scoped, tag = 'scoped memory for tpu_custom_call.1']
    #allocation7 [shape = 'u8[98304]{0}', space=vmem, size = 0x18000, scoped, tag = 'input window, operand 1, single buffered']
    #allocation8 [shape = 's32[1]{0}', space=sflag, size = 0x4, scoped, tag = 'scoped memory for tpu_custom_call.1']
    #allocation9 [shape = 'u8[98304]{0}', space=vmem, size = 0x18000, scoped, tag = 'input window, operand 2, single buffered']
    #allocation10 [shape = 'u8[16384]{0}', space=vmem, size = 0x4000, scoped, tag = 'output window, operand 0, single buffered']
    %8 = vsyncpa [#allocation5], 0
    %9 = vsyncpa [#allocation8], 0
    %10 = vsyncpa [#allocation6], 0
    // Predicated region
    $region2: #{tpu_custom_call.1} parent=1 // pred_check
      _
    $region3: #{tpu_custom_call.1} parent=1 // pred_check_branch
      %12 = sbr.rel (0) target = $region5
    $region4: #{tpu_custom_call.1} parent=1 // pred_region
      %s14 = ssub.s32 512, 512
      %15 = vsyncadd [#allocation5], %s14
      %s16 = sshll.u32 [#allocation4], 4
      %s17 = int_to_ptr.vmem [resolvable:$true] %s16
      %22 = dma.hbm_to_vmem [thread:$0]  %s0, 512, %s17, [#allocation5], 128, 128, 8
    $region5: #{tpu_custom_call.1} parent=1 // pred_fallthru
      _
    // Predicated region
    $region6: #{tpu_custom_call.1} parent=1 // pred_check
      _
    $region7: #{tpu_custom_call.1} parent=1 // pred_check_branch
      %24 = sbr.rel (0) target = $region9
    $region8: #{tpu_custom_call.1} parent=1 // pred_region
      %s26 = ssub.s32 3072, 3072
      %27 = vsyncadd [#allocation8], %s26
      %s28 = sshll.u32 [#allocation7], 4
      %s29 = int_to_ptr.vmem [resolvable:$true] %s28
      %34 = dma.hbm_to_vmem [thread:$0]  %s1, 3072, %s29, [#allocation8], 64, 64, 4
    $region9: #{tpu_custom_call.1} parent=1 // pred_fallthru
      _
    // Predicated region
    $region10: #{tpu_custom_call.1} parent=1 // pred_check
      _
    $region11: #{tpu_custom_call.1} parent=1 // pred_check_branch
      %36 = sbr.rel (0) target = $region13
    $region12: #{tpu_custom_call.1} parent=1 // pred_region
      %s38 = ssub.s32 3072, 3072
      %39 = vsyncadd [#allocation8], %s38
      %s40 = sshll.u32 [#allocation9], 4
      %s41 = int_to_ptr.vmem [resolvable:$true] %s40
      %46 = dma.hbm_to_vmem [thread:$0]  %s2, 3072, %s41, [#allocation8], 64, 64, 4
    $region13: #{tpu_custom_call.1} parent=1 // pred_fallthru
      _
    // Predicated region
    $region14: #{tpu_custom_call.1} parent=1 // pred_check
      _
    $region15: #{tpu_custom_call.1} parent=1 // pred_check_branch
      %48 = sbr.rel (0) target = $region17
    $region16: #{tpu_custom_call.1} parent=1 // pred_region
      %49 = dma.done [#allocation5], 512
    $region17: #{tpu_custom_call.1} parent=1 // pred_fallthru
      _
    // Predicated region
    $region18: #{tpu_custom_call.1} parent=1 // pred_check
      _
    $region19: #{tpu_custom_call.1} parent=1 // pred_check_branch
      %51 = sbr.rel (0) target = $region21
    $region20: #{tpu_custom_call.1} parent=1 // pred_region
      %52 = dma.done [#allocation8], 3072
    $region21: #{tpu_custom_call.1} parent=1 // pred_fallthru
      _
    // Predicated region
    $region22: #{tpu_custom_call.1} parent=1 // pred_check
      _
    $region23: #{tpu_custom_call.1} parent=1 // pred_check_branch
      %54 = sbr.rel (0) target = $region25
    $region24: #{tpu_custom_call.1} parent=1 // pred_region
      %55 = dma.done [#allocation8], 3072
    $region25: #{tpu_custom_call.1} parent=1 // pred_fallthru
      _
    %vm57 = vcmask 1040384
    %vm58 = vsmask.f32 256
    %vm59 = vmand %vm57, %vm58
    %v60 = vld [vmem:[#allocation2] sm:$0x1]
    %v61 = vsel %vm59, 0, %v60
    %62 = vst [vmem:[#allocation2] sm:$0x1] %v61
    %v63 = vld [vmem:[#allocation4] sm:$0xff]
    %v64 = vld [vmem:[#allocation4 + $0x8] sm:$0xff]
    %v65 = vpack.c.bf16 %v64, %v63
    %v67 = vunpack.c.l.b16 %v65
    %v68 = vunpack.c.h.b16 %v65
    %v69 = vpack.c.b16 %v67, %v67
    %v70 = vpack.c.b16 %v68, %v68
    %vm71 = vsmask.f32 4368
    %vm72 = vmor %vm58, %vm71
    %v74 = vshrl.u32 %v69, 16
    %v76 = vrot.slane %v74, 7
    %v77 = vshll.u32 %v69, 16
    %v79 = vor.u32 %v76, %v77
    %v80 = vrot.slane %v76, 4
    %v82 = vshrl.u32 %v70, 16
    %v84 = vrot.slane %v82, 7
    %v85 = vshll.u32 %v70, 16
    %v87 = vor.u32 %v84, %v85
    %v88 = vsel %vm72, %v80, %v87
    %v89 = vrot.slane %v84, 4
    %vm93 = vcmask 1043456
    %vm94 = vsmask.f32 7938
    %vm95 = vmand %vm93, %vm94
    %v96 = vld [vmem:[#allocation2] sm:$0xf]
    %v97 = vsel %vm95, %v79, %v96
    %98 = vst [vmem:[#allocation2] sm:$0xf] %v97
    %99 = vst [vmem:[#allocation2 + $0x4] sm:$0xf] %v88
    %v100 = vld [vmem:[#allocation2 + $0x8] sm:$0x1]
    %v101 = vsel %vm59, %v89, %v100
    %102 = vst [vmem:[#allocation2 + $0x8] sm:$0x1] %v101
    %vm103 = vmand %vm57, %vm94
    %v104 = vld [vmem:[#allocation2 + $0x8] sm:$0x1]
    %v105 = vsel %vm103, 0, %v104
    %106 = vst [vmem:[#allocation2 + $0x8] sm:$0x1] %v105
    %vm107 = vcmask 1041409
    %vm108 = vsmask.f32 1280
    %vm109 = vmand %vm107, %vm108
    %v110 = vld [vmem:[#allocation2 + $0x8] sm:$0x2]
    %v111 = vsel %vm109, 0, %v110
    %112 = vst [vmem:[#allocation2 + $0x8] sm:$0x2] %v111
    %s113 = scalar_lea.vmem [#allocation4], 16
    %v114 = vld [vmem:[%s113] sm:$0xff]
    %v115 = vld [vmem:[%s113 + $0x8] sm:$0xff]
    %v116 = vpack.c.bf16 %v115, %v114
    %v118 = vunpack.c.l.b16 %v116
    %v119 = vunpack.c.h.b16 %v116
    %v120 = vpack.c.b16 %v118, %v118
    %v121 = vpack.c.b16 %v119, %v119
    %vm122 = vsmask.f32 5392
    %vm123 = vmor %vm108, %vm122
    %v125 = vshrl.u32 %v120, 16
    %v127 = vrot.slane %v125, 6
    %v128 = vshll.u32 %v120, 16
    %v130 = vrot.slane %v128, 7
    %v131 = vor.u32 %v127, %v130
    %v132 = vrot.slane %v131, 4
    %v134 = vshrl.u32 %v121, 16
    %v136 = vrot.slane %v134, 6
    %v137 = vshll.u32 %v121, 16
    %v139 = vrot.slane %v137, 7
    %v140 = vor.u32 %v136, %v139
    %v141 = vsel %vm123, %v132, %v140
    %v142 = vrot.slane %v140, 4
    %vm146 = vcmask 1043457
    %vm147 = vsmask.f32 7942
    %vm148 = vmand %vm146, %vm147
    %v149 = vld [vmem:[#allocation2 + $0x8] sm:$0xe]
    %v150 = vsel %vm148, %v131, %v149
    %151 = vst [vmem:[#allocation2 + $0x8] sm:$0xe] %v150
    %152 = vst [vmem:[#allocation2 + $0xc] sm:$0xf] %v141
    %vm153 = vcmask 1041408
    %vm154 = vmand %vm153, %vm108
    %v155 = vld [vmem:[#allocation2 + $0x10] sm:$0x3]
    %v156 = vsel %vm154, %v142, %v155
    %157 = vst [vmem:[#allocation2 + $0x10] sm:$0x3] %v156
    %vm158 = vmand %vm107, %vm147
    %v159 = vld [vmem:[#allocation2 + $0x10] sm:$0x2]
    %v160 = vsel %vm158, 0, %v159
    %161 = vst [vmem:[#allocation2 + $0x10] sm:$0x2] %v160
    %v162 = vld [vmem:[#allocation2] sm:$0xf]
    %v163 = vld [vmem:[#allocation2 + $0x4] sm:$0xf]
    %v164 = vld [vmem:[#allocation2 + $0x8] sm:$0xf]
    %v165 = vld [vmem:[#allocation2 + $0xc] sm:$0xf]
    %v166 = vld [vmem:[#allocation2 + $0x10] sm:$0x1]
    %v167 = vld [vmem:[#allocation7] sm:$0xf]
    %v168 = vld [vmem:[#allocation7 + $0x4] sm:$0xf]
    %v169 = vld [vmem:[#allocation7 + $0x8] sm:$0xf]
    %v170 = vld [vmem:[#allocation7 + $0xc] sm:$0xf]
    %v171 = vld [vmem:[#allocation7 + $0x10] sm:$0xf]
    %v172 = vld [vmem:[#allocation7 + $0x14] sm:$0xf]
    %v173 = vld [vmem:[#allocation7 + $0x18] sm:$0xf]
    %v174 = vld [vmem:[#allocation7 + $0x1c] sm:$0xf]
    %v175 = vld [vmem:[#allocation7 + $0x20] sm:$0xf]
    %v176 = vld [vmem:[#allocation7 + $0x24] sm:$0xf]
    %v177 = vld [vmem:[#allocation7 + $0x28] sm:$0xf]
    %v178 = vld [vmem:[#allocation7 + $0x2c] sm:$0xf]
    %v179 = vld [vmem:[#allocation7 + $0x30] sm:$0xf]
    %v180 = vld [vmem:[#allocation7 + $0x34] sm:$0xf]
    %v181 = vld [vmem:[#allocation7 + $0x38] sm:$0xf]
    %v182 = vld [vmem:[#allocation7 + $0x3c] sm:$0xf]
    %v183 = vld [vmem:[#allocation2 + $0x10] sm:$0x3]
    %s184 = scalar_lea.vmem [#allocation7], 64
    %v185 = vld [vmem:[%s184] sm:$0xf]
    %v186 = vld [vmem:[%s184 + $0x4] sm:$0xf]
    %v187 = vld [vmem:[%s184 + $0x8] sm:$0xf]
    %v188 = vld [vmem:[%s184 + $0xc] sm:$0xf]
    %v189 = vld [vmem:[%s184 + $0x10] sm:$0xf]
    %v190 = vld [vmem:[%s184 + $0x14] sm:$0xf]
    %v191 = vld [vmem:[%s184 + $0x18] sm:$0xf]
    %v192 = vld [vmem:[%s184 + $0x1c] sm:$0xf]
    %v193 = vld [vmem:[%s184 + $0x20] sm:$0xf]
    %v194 = vld [vmem:[%s184 + $0x24] sm:$0xf]
    %v195 = vld [vmem:[%s184 + $0x28] sm:$0xf]
    %v196 = vld [vmem:[%s184 + $0x2c] sm:$0xf]
    %v197 = vld [vmem:[%s184 + $0x30] sm:$0xf]
    %v198 = vld [vmem:[%s184 + $0x34] sm:$0xf]
    %v199 = vld [vmem:[%s184 + $0x38] sm:$0xf]
    %v200 = vld [vmem:[%s184 + $0x3c] sm:$0xf]
    %v206 = vunpack.c.l.b16 %v162
    %v207 = vunpack.c.l.b16 %v163
    %v208 = vunpack.c.l.b16 %v164
    %v209 = vunpack.c.l.b16 %v165
    %v210 = vunpack.c.l.b16 %v183
    %v211 = vpack.c.b16 %v207, %v206
    %v212 = vpack.c.b16 %v209, %v208
    %v213 = vpack.c.b16 %v210, %v210
    %vm214 = vsmask.f32 7424
    %v216 = vshrl.u32 %v211, 16
    %v218 = vshll.u32 %v211, 16
    %v220 = vrot.slane %v218, 1
    %v221 = vor.u32 %v216, %v220
    %v223 = vshll.u32 %v212, 16
    %v225 = vrot.slane %v223, 1
    %v226 = vsel %vm214, %v221, %v225
    %v227 = vshrl.u32 %v212, 16
    %v229 = vor.u32 %v227, %v225
    %v231 = vshll.u32 %v213, 16
    %v233 = vrot.slane %v231, 1
    %v234 = vsel %vm214, %v229, %v233
    %v235 = vshrl.u32 %v213, 16
    %v237 = vor.u32 %v235, %v233
    %v257 = vunpack.c.l.b16 %v185
    %v258 = vunpack.c.l.b16 %v186
    %v259 = vunpack.c.l.b16 %v187
    %v260 = vunpack.c.l.b16 %v188
    %v261 = vunpack.c.l.b16 %v189
    %v262 = vunpack.c.l.b16 %v190
    %v263 = vunpack.c.l.b16 %v191
    %v264 = vunpack.c.l.b16 %v192
    %v265 = vunpack.c.l.b16 %v193
    %v266 = vunpack.c.l.b16 %v194
    %v267 = vunpack.c.l.b16 %v195
    %v268 = vunpack.c.l.b16 %v196
    %v269 = vunpack.c.l.b16 %v197
    %v270 = vunpack.c.l.b16 %v198
    %v271 = vunpack.c.l.b16 %v199
    %v272 = vunpack.c.l.b16 %v200
    %v273 = vpack.c.b16 %v258, %v257
    %v274 = vpack.c.b16 %v260, %v259
    %v275 = vpack.c.b16 %v262, %v261
    %v276 = vpack.c.b16 %v264, %v263
    %v277 = vpack.c.b16 %v266, %v265
    %v278 = vpack.c.b16 %v268, %v267
    %v279 = vpack.c.b16 %v270, %v269
    %v280 = vpack.c.b16 %v272, %v271
    %289 = vmatprep.subr.bf16.mxu0 0
    %290 = vmatpush1.bf16.msra.mxu0 %v280
    %291 = vmatprep.subr.bf16.mxu0 0
    %292 = vmatpush1.bf16.msra.mxu0 %v279
    %293 = vmatprep.subr.bf16.mxu0 0
    %294 = vmatpush1.bf16.msra.mxu0 %v278
    %295 = vmatprep.subr.bf16.mxu0 0
    %296 = vmatpush1.bf16.msra.mxu0 %v277
    %297 = vmatprep.subr.bf16.mxu0 0
    %298 = vmatpush1.bf16.msra.mxu0 %v276
    %299 = vmatprep.subr.bf16.mxu0 0
    %300 = vmatpush1.bf16.msra.mxu0 %v275
    %301 = vmatprep.subr.bf16.mxu0 0
    %302 = vmatpush1.bf16.msra.mxu0 %v274
    %303 = vmatprep.subr.bf16.mxu0 0
    %304 = vmatpush1.bf16.msra.mxu0 %v273
    %305 = vmatprep.subr.bf16.mxu0 0
    %306 = vmatpush2.bf16.msra.mxu0 0
    %307 = vmatprep.subr.bf16.mxu0 0
    %308 = vmatpush2.bf16.msra.mxu0 0
    %309 = vmatprep.subr.bf16.mxu0 0
    %310 = vmatpush2.bf16.msra.mxu0 0
    %311 = vmatprep.subr.bf16.mxu0 0
    %312 = vmatpush2.bf16.msra.mxu0 0
    %313 = vmatprep.subr.bf16.mxu0 0
    %314 = vmatpush2.bf16.msra.mxu0 0
    %315 = vmatprep.subr.bf16.mxu0 0
    %316 = vmatpush2.bf16.msra.mxu0 0
    %317 = vmatprep.subr.bf16.mxu0 0
    %318 = vmatpush2.bf16.msra.mxu0 0
    %319 = vmatprep.subr.bf16.mxu0 0
    %320 = vmatpush2.bf16.msra.mxu0 0
    %321 = vmatprep.mubr.bf16.mxu0 0
    %322 = vmatmul.mubr.bf16.gmra.mxu0 %v226
    %v323 = vpop.f32.mrf.mxu0
    %v324 = vadd.f32 0.0, %v323
    %v325 = vpop.f32.mrf.mxu0
    %v326 = vpop.f32.mrf.mxu0
    %v327 = vadd.f32 0.0, %v326
    %v328 = vpop.f32.mrf.mxu0
    %329 = vmatprep.mubr.bf16.mxu0 0
    %330 = vmatmul.mubr.bf16.gmra.mxu0 %v234
    %v331 = vpop.f32.mrf.mxu0
    %v332 = vadd.f32 0.0, %v331
    %v333 = vpop.f32.mrf.mxu0
    %v334 = vpop.f32.mrf.mxu0
    %v335 = vadd.f32 0.0, %v334
    %v336 = vpop.f32.mrf.mxu0
    %337 = vmatprep.mubr.bf16.mxu0 0
    %338 = vmatmul.mubr.bf16.gmra.mxu0 %v237
    %v339 = vpop.f32.mrf.mxu0
    %v340 = vadd.f32 0.0, %v339
    %v341 = vpop.f32.mrf.mxu0
    %v342 = vpop.f32.mrf.mxu0
    %v343 = vpop.f32.mrf.mxu0
    %344 = vdwg.mxu0
    %v346 = vunpack.c.l.b16 %v166
    %v347 = vpack.c.b16 %v346, %v346
    %v367 = vunpack.c.l.b16 %v167
    %v368 = vunpack.c.l.b16 %v168
    %v369 = vunpack.c.l.b16 %v169
    %v370 = vunpack.c.l.b16 %v170
    %v371 = vunpack.c.l.b16 %v171
    %v372 = vunpack.c.l.b16 %v172
    %v373 = vunpack.c.l.b16 %v173
    %v374 = vunpack.c.l.b16 %v174
    %v375 = vunpack.c.l.b16 %v175
    %v376 = vunpack.c.l.b16 %v176
    %v377 = vunpack.c.l.b16 %v177
    %v378 = vunpack.c.l.b16 %v178
    %v379 = vunpack.c.l.b16 %v179
    %v380 = vunpack.c.l.b16 %v180
    %v381 = vunpack.c.l.b16 %v181
    %v382 = vunpack.c.l.b16 %v182
    %v383 = vpack.c.b16 %v368, %v367
    %v384 = vpack.c.b16 %v370, %v369
    %v385 = vpack.c.b16 %v372, %v371
    %v386 = vpack.c.b16 %v374, %v373
    %v387 = vpack.c.b16 %v376, %v375
    %v388 = vpack.c.b16 %v378, %v377
    %v389 = vpack.c.b16 %v380, %v379
    %v390 = vpack.c.b16 %v382, %v381
    %399 = vmatprep.subr.bf16.mxu0 0
    %400 = vmatpush1.bf16.msra.mxu0 %v390
    %401 = vmatprep.subr.bf16.mxu0 0
    %402 = vmatpush1.bf16.msra.mxu0 %v389
    %403 = vmatprep.subr.bf16.mxu0 0
    %404 = vmatpush1.bf16.msra.mxu0 %v388
    %405 = vmatprep.subr.bf16.mxu0 0
    %406 = vmatpush1.bf16.msra.mxu0 %v387
    %407 = vmatprep.subr.bf16.mxu0 0
    %408 = vmatpush1.bf16.msra.mxu0 %v386
    %409 = vmatprep.subr.bf16.mxu0 0
    %410 = vmatpush1.bf16.msra.mxu0 %v385
    %411 = vmatprep.subr.bf16.mxu0 0
    %412 = vmatpush1.bf16.msra.mxu0 %v384
    %413 = vmatprep.subr.bf16.mxu0 0
    %414 = vmatpush1.bf16.msra.mxu0 %v383
    %415 = vmatprep.subr.bf16.mxu0 0
    %416 = vmatpush2.bf16.msra.mxu0 0
    %417 = vmatprep.subr.bf16.mxu0 0
    %418 = vmatpush2.bf16.msra.mxu0 0
    %419 = vmatprep.subr.bf16.mxu0 0
    %420 = vmatpush2.bf16.msra.mxu0 0
    %421 = vmatprep.subr.bf16.mxu0 0
    %422 = vmatpush2.bf16.msra.mxu0 0
    %423 = vmatprep.subr.bf16.mxu0 0
    %424 = vmatpush2.bf16.msra.mxu0 0
    %425 = vmatprep.subr.bf16.mxu0 0
    %426 = vmatpush2.bf16.msra.mxu0 0
    %427 = vmatprep.subr.bf16.mxu0 0
    %428 = vmatpush2.bf16.msra.mxu0 0
    %429 = vmatprep.subr.bf16.mxu0 0
    %430 = vmatpush2.bf16.msra.mxu0 0
    %431 = vmatprep.mubr.bf16.mxu0 0
    %432 = vmatmul.mubr.bf16.gmra.mxu0 %v211
    %v433 = vpop.f32.mrf.mxu0
    %v434 = vadd.f32 %v324, %v433
    %v435 = vpop.f32.mrf.mxu0
    %v436 = vpop.f32.mrf.mxu0
    %v437 = vadd.f32 %v327, %v436
    %v438 = vpop.f32.mrf.mxu0
    %439 = vmatprep.mubr.bf16.mxu0 0
    %440 = vmatmul.mubr.bf16.gmra.mxu0 %v212
    %v441 = vpop.f32.mrf.mxu0
    %v442 = vadd.f32 %v332, %v441
    %v443 = vpop.f32.mrf.mxu0
    %v444 = vpop.f32.mrf.mxu0
    %v445 = vadd.f32 %v335, %v444
    %v446 = vpop.f32.mrf.mxu0
    %447 = vmatprep.mubr.bf16.mxu0 0
    %448 = vmatmul.mubr.bf16.gmra.mxu0 %v347
    %v449 = vpop.f32.mrf.mxu0
    %v450 = vadd.f32 %v340, %v449
    %v451 = vpop.f32.mrf.mxu0
    %v452 = vpop.f32.mrf.mxu0
    %v453 = vpop.f32.mrf.mxu0
    %454 = vdwg.mxu0
    %v455 = vld [vmem:[#allocation2] sm:$0xe]
    %s456 = scalar_lea.vmem [#allocation7], 128
    %v457 = vld [vmem:[%s456] sm:$0xf]
    %v458 = vld [vmem:[%s456 + $0x4] sm:$0xf]
    %v459 = vld [vmem:[%s456 + $0x8] sm:$0xf]
    %v460 = vld [vmem:[%s456 + $0xc] sm:$0xf]
    %v461 = vld [vmem:[%s456 + $0x10] sm:$0xf]
    %v462 = vld [vmem:[%s456 + $0x14] sm:$0xf]
    %v463 = vld [vmem:[%s456 + $0x18] sm:$0xf]
    %v464 = vld [vmem:[%s456 + $0x1c] sm:$0xf]
    %v465 = vld [vmem:[%s456 + $0x20] sm:$0xf]
    %v466 = vld [vmem:[%s456 + $0x24] sm:$0xf]
    %v467 = vld [vmem:[%s456 + $0x28] sm:$0xf]
    %v468 = vld [vmem:[%s456 + $0x2c] sm:$0xf]
    %v469 = vld [vmem:[%s456 + $0x30] sm:$0xf]
    %v470 = vld [vmem:[%s456 + $0x34] sm:$0xf]
    %v471 = vld [vmem:[%s456 + $0x38] sm:$0xf]
    %v472 = vld [vmem:[%s456 + $0x3c] sm:$0xf]
    %v474 = vunpack.c.l.b16 %v455
    %v475 = vpack.c.b16 %v207, %v474
    %vm476 = vcmask 1046528
    %v477 = vrot.slane %v475, 1
    %v478 = vrot.slane %v212, 1
    %v479 = vsel %vm476, %v477, %v478
    %v480 = vrot.slane %v213, 1
    %v481 = vsel %vm476, %v478, %v480
    %v501 = vunpack.c.l.b16 %v457
    %v502 = vunpack.c.l.b16 %v458
    %v503 = vunpack.c.l.b16 %v459
    %v504 = vunpack.c.l.b16 %v460
    %v505 = vunpack.c.l.b16 %v461
    %v506 = vunpack.c.l.b16 %v462
    %v507 = vunpack.c.l.b16 %v463
    %v508 = vunpack.c.l.b16 %v464
    %v509 = vunpack.c.l.b16 %v465
    %v510 = vunpack.c.l.b16 %v466
    %v511 = vunpack.c.l.b16 %v467
    %v512 = vunpack.c.l.b16 %v468
    %v513 = vunpack.c.l.b16 %v469
    %v514 = vunpack.c.l.b16 %v470
    %v515 = vunpack.c.l.b16 %v471
    %v516 = vunpack.c.l.b16 %v472
    %v517 = vpack.c.b16 %v502, %v501
    %v518 = vpack.c.b16 %v504, %v503
    %v519 = vpack.c.b16 %v506, %v505
    %v520 = vpack.c.b16 %v508, %v507
    %v521 = vpack.c.b16 %v510, %v509
    %v522 = vpack.c.b16 %v512, %v511
    %v523 = vpack.c.b16 %v514, %v513
    %v524 = vpack.c.b16 %v516, %v515
    %533 = vmatprep.subr.bf16.mxu0 0
    %534 = vmatpush1.bf16.msra.mxu0 %v524
    %535 = vmatprep.subr.bf16.mxu0 0
    %536 = vmatpush1.bf16.msra.mxu0 %v523
    %537 = vmatprep.subr.bf16.mxu0 0
    %538 = vmatpush1.bf16.msra.mxu0 %v522
    %539 = vmatprep.subr.bf16.mxu0 0
    %540 = vmatpush1.bf16.msra.mxu0 %v521
    %541 = vmatprep.subr.bf16.mxu0 0
    %542 = vmatpush1.bf16.msra.mxu0 %v520
    %543 = vmatprep.subr.bf16.mxu0 0
    %544 = vmatpush1.bf16.msra.mxu0 %v519
    %545 = vmatprep.subr.bf16.mxu0 0
    %546 = vmatpush1.bf16.msra.mxu0 %v518
    %547 = vmatprep.subr.bf16.mxu0 0
    %548 = vmatpush1.bf16.msra.mxu0 %v517
    %549 = vmatprep.subr.bf16.mxu0 0
    %550 = vmatpush2.bf16.msra.mxu0 0
    %551 = vmatprep.subr.bf16.mxu0 0
    %552 = vmatpush2.bf16.msra.mxu0 0
    %553 = vmatprep.subr.bf16.mxu0 0
    %554 = vmatpush2.bf16.msra.mxu0 0
    %555 = vmatprep.subr.bf16.mxu0 0
    %556 = vmatpush2.bf16.msra.mxu0 0
    %557 = vmatprep.subr.bf16.mxu0 0
    %558 = vmatpush2.bf16.msra.mxu0 0
    %559 = vmatprep.subr.bf16.mxu0 0
    %560 = vmatpush2.bf16.msra.mxu0 0
    %561 = vmatprep.subr.bf16.mxu0 0
    %562 = vmatpush2.bf16.msra.mxu0 0
    %563 = vmatprep.subr.bf16.mxu0 0
    %564 = vmatpush2.bf16.msra.mxu0 0
    %565 = vmatprep.mubr.bf16.mxu0 0
    %566 = vmatmul.mubr.bf16.gmra.mxu0 %v479
    %v567 = vpop.f32.mrf.mxu0
    %v568 = vadd.f32 0.0, %v567
    %v569 = vpop.f32.mrf.mxu0
    %v570 = vpop.f32.mrf.mxu0
    %v571 = vadd.f32 0.0, %v570
    %v572 = vpop.f32.mrf.mxu0
    %573 = vmatprep.mubr.bf16.mxu0 0
    %574 = vmatmul.mubr.bf16.gmra.mxu0 %v481
    %v575 = vpop.f32.mrf.mxu0
    %v576 = vadd.f32 0.0, %v575
    %v577 = vpop.f32.mrf.mxu0
    %v578 = vpop.f32.mrf.mxu0
    %v579 = vadd.f32 0.0, %v578
    %v580 = vpop.f32.mrf.mxu0
    %581 = vmatprep.mubr.bf16.mxu0 0
    %582 = vmatmul.mubr.bf16.gmra.mxu0 %v480
    %v583 = vpop.f32.mrf.mxu0
    %v584 = vadd.f32 0.0, %v583
    %v585 = vpop.f32.mrf.mxu0
    %v586 = vpop.f32.mrf.mxu0
    %v587 = vpop.f32.mrf.mxu0
    %588 = vdwg.mxu0
    %v589 = vadd.f32 %v434, %v568
    %v590 = vadd.f32 %v437, %v571
    %v591 = vadd.f32 %v442, %v576
    %v592 = vadd.f32 %v445, %v579
    %v593 = vadd.f32 %v450, %v584
    %vm594 = vcmp.gt.f32.partialorder %v589, 0.0
    %vm595 = vcmp.gt.f32.partialorder %v590, 0.0
    %vm596 = vcmp.gt.f32.partialorder %v591, 0.0
    %vm597 = vcmp.gt.f32.partialorder %v592, 0.0
    %vm598 = vcmp.gt.f32.partialorder %v593, 0.0
    %v599 = vmul.f32 %v589, 0.1
    %v600 = vmul.f32 %v590, 0.1
    %v601 = vmul.f32 %v591, 0.1
    %v602 = vmul.f32 %v592, 0.1
    %v603 = vmul.f32 %v593, 0.1
    %v604 = vsel %vm594, %v589, %v599
    %v605 = vsel %vm595, %v590, %v600
    %v606 = vsel %vm596, %v591, %v601
    %v607 = vsel %vm597, %v592, %v602
    %v608 = vsel %vm598, %v593, %v603
    %v609 = vpack.c.bf16 %v605, %v604
    %v610 = vpack.c.bf16 %v607, %v606
    %v611 = vpack.c.bf16 %v608, %v608
    %v615 = vunpack.c.l.b16 %v609
    %v616 = vunpack.c.h.b16 %v609
    %v617 = vunpack.c.l.b16 %v610
    %v618 = vunpack.c.h.b16 %v610
    %v619 = vunpack.c.l.b16 %v611
    %v620 = vpack.c.b16 %v615, %v615
    %v621 = vpack.c.b16 %v616, %v616
    %v622 = vpack.c.b16 %v617, %v617
    %v623 = vpack.c.b16 %v618, %v618
    %v624 = vpack.c.b16 %v619, %v619
    %v626 = vshrl.u32 %v620, 16
    %v628 = vrot.slane %v626, 7
    %v629 = vshll.u32 %v620, 16
    %v631 = vor.u32 %v628, %v629
    %v632 = vrot.slane %v628, 4
    %v634 = vshrl.u32 %v621, 16
    %v636 = vrot.slane %v634, 7
    %v637 = vshll.u32 %v621, 16
    %v639 = vor.u32 %v636, %v637
    %v640 = vsel %vm72, %v632, %v639
    %v641 = vrot.slane %v636, 4
    %v643 = vshrl.u32 %v622, 16
    %v645 = vrot.slane %v643, 7
    %v646 = vshll.u32 %v622, 16
    %v648 = vor.u32 %v645, %v646
    %v649 = vsel %vm72, %v641, %v648
    %v650 = vrot.slane %v645, 4
    %v652 = vshrl.u32 %v623, 16
    %v654 = vrot.slane %v652, 7
    %v655 = vshll.u32 %v623, 16
    %v657 = vor.u32 %v654, %v655
    %v658 = vsel %vm72, %v650, %v657
    %v659 = vrot.slane %v654, 4
    %v661 = vshrl.u32 %v624, 16
    %v663 = vrot.slane %v661, 7
    %v664 = vshll.u32 %v624, 16
    %v666 = vor.u32 %v663, %v664
    %v667 = vsel %vm72, %v659, %v666
    %v673 = vld [vmem:[#allocation3] sm:$0xf]
    %v674 = vsel %vm95, %v631, %v673
    %675 = vst [vmem:[#allocation3] sm:$0xf] %v674
    %676 = vst [vmem:[#allocation3 + $0x4] sm:$0xf] %v640
    %677 = vst [vmem:[#allocation3 + $0x8] sm:$0xf] %v649
    %678 = vst [vmem:[#allocation3 + $0xc] sm:$0xf] %v658
    %v679 = vld [vmem:[#allocation3 + $0x10] sm:$0x3]
    %v680 = vsel %vm154, %v667, %v679
    %681 = vst [vmem:[#allocation3 + $0x10] sm:$0x3] %v680
    %v682 = vld [vmem:[#allocation3] sm:$0x1]
    %v683 = vsel %vm59, 0, %v682
    %684 = vst [vmem:[#allocation3] sm:$0x1] %v683
    %v685 = vld [vmem:[#allocation3 + $0x8] sm:$0x1]
    %v686 = vsel %vm103, 0, %v685
    %687 = vst [vmem:[#allocation3 + $0x8] sm:$0x1] %v686
    %v688 = vld [vmem:[#allocation3 + $0x8] sm:$0x2]
    %v689 = vsel %vm109, 0, %v688
    %690 = vst [vmem:[#allocation3 + $0x8] sm:$0x2] %v689
    %v691 = vld [vmem:[#allocation3 + $0x10] sm:$0x2]
    %v692 = vsel %vm158, 0, %v691
    %693 = vst [vmem:[#allocation3 + $0x10] sm:$0x2] %v692
    %v694 = vld [vmem:[#allocation3] sm:$0xf]
    %v695 = vld [vmem:[#allocation3 + $0x4] sm:$0xf]
    %v696 = vld [vmem:[#allocation3 + $0x8] sm:$0xf]
    %v697 = vld [vmem:[#allocation3 + $0xc] sm:$0xf]
    %v698 = vld [vmem:[#allocation3 + $0x10] sm:$0x1]
    %v699 = vld [vmem:[#allocation9] sm:$0xf]
    %v700 = vld [vmem:[#allocation9 + $0x4] sm:$0xf]
    %v701 = vld [vmem:[#allocation9 + $0x8] sm:$0xf]
    %v702 = vld [vmem:[#allocation9 + $0xc] sm:$0xf]
    %v703 = vld [vmem:[#allocation9 + $0x10] sm:$0xf]
    %v704 = vld [vmem:[#allocation9 + $0x14] sm:$0xf]
    %v705 = vld [vmem:[#allocation9 + $0x18] sm:$0xf]
    %v706 = vld [vmem:[#allocation9 + $0x1c] sm:$0xf]
    %v707 = vld [vmem:[#allocation9 + $0x20] sm:$0xf]
    %v708 = vld [vmem:[#allocation9 + $0x24] sm:$0xf]
    %v709 = vld [vmem:[#allocation9 + $0x28] sm:$0xf]
    %v710 = vld [vmem:[#allocation9 + $0x2c] sm:$0xf]
    %v711 = vld [vmem:[#allocation9 + $0x30] sm:$0xf]
    %v712 = vld [vmem:[#allocation9 + $0x34] sm:$0xf]
    %v713 = vld [vmem:[#allocation9 + $0x38] sm:$0xf]
    %v714 = vld [vmem:[#allocation9 + $0x3c] sm:$0xf]
    %v715 = vld [vmem:[#allocation3 + $0x10] sm:$0x3]
    %s716 = scalar_lea.vmem [#allocation9], 64
    %v717 = vld [vmem:[%s716] sm:$0xf]
    %v718 = vld [vmem:[%s716 + $0x4] sm:$0xf]
    %v719 = vld [vmem:[%s716 + $0x8] sm:$0xf]
    %v720 = vld [vmem:[%s716 + $0xc] sm:$0xf]
    %v721 = vld [vmem:[%s716 + $0x10] sm:$0xf]
    %v722 = vld [vmem:[%s716 + $0x14] sm:$0xf]
    %v723 = vld [vmem:[%s716 + $0x18] sm:$0xf]
    %v724 = vld [vmem:[%s716 + $0x1c] sm:$0xf]
    %v725 = vld [vmem:[%s716 + $0x20] sm:$0xf]
    %v726 = vld [vmem:[%s716 + $0x24] sm:$0xf]
    %v727 = vld [vmem:[%s716 + $0x28] sm:$0xf]
    %v728 = vld [vmem:[%s716 + $0x2c] sm:$0xf]
    %v729 = vld [vmem:[%s716 + $0x30] sm:$0xf]
    %v730 = vld [vmem:[%s716 + $0x34] sm:$0xf]
    %v731 = vld [vmem:[%s716 + $0x38] sm:$0xf]
    %v732 = vld [vmem:[%s716 + $0x3c] sm:$0xf]
    %v738 = vunpack.c.l.b16 %v694
    %v739 = vunpack.c.l.b16 %v695
    %v740 = vunpack.c.l.b16 %v696
    %v741 = vunpack.c.l.b16 %v697
    %v742 = vunpack.c.l.b16 %v715
    %v743 = vpack.c.b16 %v739, %v738
    %v744 = vpack.c.b16 %v741, %v740
    %v745 = vpack.c.b16 %v742, %v742
    %v747 = vshrl.u32 %v743, 16
    %v749 = vshll.u32 %v743, 16
    %v751 = vrot.slane %v749, 1
    %v752 = vor.u32 %v747, %v751
    %v754 = vshll.u32 %v744, 16
    %v756 = vrot.slane %v754, 1
    %v757 = vsel %vm214, %v752, %v756
    %v758 = vshrl.u32 %v744, 16
    %v760 = vor.u32 %v758, %v756
    %v762 = vshll.u32 %v745, 16
    %v764 = vrot.slane %v762, 1
    %v765 = vsel %vm214, %v760, %v764
    %v766 = vshrl.u32 %v745, 16
    %v768 = vor.u32 %v766, %v764
    %v788 = vunpack.c.l.b16 %v717
    %v789 = vunpack.c.l.b16 %v718
    %v790 = vunpack.c.l.b16 %v719
    %v791 = vunpack.c.l.b16 %v720
    %v792 = vunpack.c.l.b16 %v721
    %v793 = vunpack.c.l.b16 %v722
    %v794 = vunpack.c.l.b16 %v723
    %v795 = vunpack.c.l.b16 %v724
    %v796 = vunpack.c.l.b16 %v725
    %v797 = vunpack.c.l.b16 %v726
    %v798 = vunpack.c.l.b16 %v727
    %v799 = vunpack.c.l.b16 %v728
    %v800 = vunpack.c.l.b16 %v729
    %v801 = vunpack.c.l.b16 %v730
    %v802 = vunpack.c.l.b16 %v731
    %v803 = vunpack.c.l.b16 %v732
    %v804 = vpack.c.b16 %v789, %v788
    %v805 = vpack.c.b16 %v791, %v790
    %v806 = vpack.c.b16 %v793, %v792
    %v807 = vpack.c.b16 %v795, %v794
    %v808 = vpack.c.b16 %v797, %v796
    %v809 = vpack.c.b16 %v799, %v798
    %v810 = vpack.c.b16 %v801, %v800
    %v811 = vpack.c.b16 %v803, %v802
    %820 = vmatprep.subr.bf16.mxu0 0
    %821 = vmatpush1.bf16.msra.mxu0 %v811
    %822 = vmatprep.subr.bf16.mxu0 0
    %823 = vmatpush1.bf16.msra.mxu0 %v810
    %824 = vmatprep.subr.bf16.mxu0 0
    %825 = vmatpush1.bf16.msra.mxu0 %v809
    %826 = vmatprep.subr.bf16.mxu0 0
    %827 = vmatpush1.bf16.msra.mxu0 %v808
    %828 = vmatprep.subr.bf16.mxu0 0
    %829 = vmatpush1.bf16.msra.mxu0 %v807
    %830 = vmatprep.subr.bf16.mxu0 0
    %831 = vmatpush1.bf16.msra.mxu0 %v806
    %832 = vmatprep.subr.bf16.mxu0 0
    %833 = vmatpush1.bf16.msra.mxu0 %v805
    %834 = vmatprep.subr.bf16.mxu0 0
    %835 = vmatpush1.bf16.msra.mxu0 %v804
    %836 = vmatprep.subr.bf16.mxu0 0
    %837 = vmatpush2.bf16.msra.mxu0 0
    %838 = vmatprep.subr.bf16.mxu0 0
    %839 = vmatpush2.bf16.msra.mxu0 0
    %840 = vmatprep.subr.bf16.mxu0 0
    %841 = vmatpush2.bf16.msra.mxu0 0
    %842 = vmatprep.subr.bf16.mxu0 0
    %843 = vmatpush2.bf16.msra.mxu0 0
    %844 = vmatprep.subr.bf16.mxu0 0
    %845 = vmatpush2.bf16.msra.mxu0 0
    %846 = vmatprep.subr.bf16.mxu0 0
    %847 = vmatpush2.bf16.msra.mxu0 0
    %848 = vmatprep.subr.bf16.mxu0 0
    %849 = vmatpush2.bf16.msra.mxu0 0
    %850 = vmatprep.subr.bf16.mxu0 0
    %851 = vmatpush2.bf16.msra.mxu0 0
    %852 = vmatprep.mubr.bf16.mxu0 0
    %853 = vmatmul.mubr.bf16.gmra.mxu0 %v757
    %v854 = vpop.f32.mrf.mxu0
    %v855 = vadd.f32 0.0, %v854
    %v856 = vpop.f32.mrf.mxu0
    %v857 = vpop.f32.mrf.mxu0
    %v858 = vadd.f32 0.0, %v857
    %v859 = vpop.f32.mrf.mxu0
    %860 = vmatprep.mubr.bf16.mxu0 0
    %861 = vmatmul.mubr.bf16.gmra.mxu0 %v765
    %v862 = vpop.f32.mrf.mxu0
    %v863 = vadd.f32 0.0, %v862
    %v864 = vpop.f32.mrf.mxu0
    %v865 = vpop.f32.mrf.mxu0
    %v866 = vadd.f32 0.0, %v865
    %v867 = vpop.f32.mrf.mxu0
    %868 = vmatprep.mubr.bf16.mxu0 0
    %869 = vmatmul.mubr.bf16.gmra.mxu0 %v768
    %v870 = vpop.f32.mrf.mxu0
    %v871 = vadd.f32 0.0, %v870
    %v872 = vpop.f32.mrf.mxu0
    %v873 = vpop.f32.mrf.mxu0
    %v874 = vpop.f32.mrf.mxu0
    %875 = vdwg.mxu0
    %v877 = vunpack.c.l.b16 %v698
    %v878 = vpack.c.b16 %v877, %v877
    %v898 = vunpack.c.l.b16 %v699
    %v899 = vunpack.c.l.b16 %v700
    %v900 = vunpack.c.l.b16 %v701
    %v901 = vunpack.c.l.b16 %v702
    %v902 = vunpack.c.l.b16 %v703
    %v903 = vunpack.c.l.b16 %v704
    %v904 = vunpack.c.l.b16 %v705
    %v905 = vunpack.c.l.b16 %v706
    %v906 = vunpack.c.l.b16 %v707
    %v907 = vunpack.c.l.b16 %v708
    %v908 = vunpack.c.l.b16 %v709
    %v909 = vunpack.c.l.b16 %v710
    %v910 = vunpack.c.l.b16 %v711
    %v911 = vunpack.c.l.b16 %v712
    %v912 = vunpack.c.l.b16 %v713
    %v913 = vunpack.c.l.b16 %v714
    %v914 = vpack.c.b16 %v899, %v898
    %v915 = vpack.c.b16 %v901, %v900
    %v916 = vpack.c.b16 %v903, %v902
    %v917 = vpack.c.b16 %v905, %v904
    %v918 = vpack.c.b16 %v907, %v906
    %v919 = vpack.c.b16 %v909, %v908
    %v920 = vpack.c.b16 %v911, %v910
    %v921 = vpack.c.b16 %v913, %v912
    %930 = vmatprep.subr.bf16.mxu0 0
    %931 = vmatpush1.bf16.msra.mxu0 %v921
    %932 = vmatprep.subr.bf16.mxu0 0
    %933 = vmatpush1.bf16.msra.mxu0 %v920
    %934 = vmatprep.subr.bf16.mxu0 0
    %935 = vmatpush1.bf16.msra.mxu0 %v919
    %936 = vmatprep.subr.bf16.mxu0 0
    %937 = vmatpush1.bf16.msra.mxu0 %v918
    %938 = vmatprep.subr.bf16.mxu0 0
    %939 = vmatpush1.bf16.msra.mxu0 %v917
    %940 = vmatprep.subr.bf16.mxu0 0
    %941 = vmatpush1.bf16.msra.mxu0 %v916
    %942 = vmatprep.subr.bf16.mxu0 0
    %943 = vmatpush1.bf16.msra.mxu0 %v915
    %944 = vmatprep.subr.bf16.mxu0 0
    %945 = vmatpush1.bf16.msra.mxu0 %v914
    %946 = vmatprep.subr.bf16.mxu0 0
    %947 = vmatpush2.bf16.msra.mxu0 0
    %948 = vmatprep.subr.bf16.mxu0 0
    %949 = vmatpush2.bf16.msra.mxu0 0
    %950 = vmatprep.subr.bf16.mxu0 0
    %951 = vmatpush2.bf16.msra.mxu0 0
    %952 = vmatprep.subr.bf16.mxu0 0
    %953 = vmatpush2.bf16.msra.mxu0 0
    %954 = vmatprep.subr.bf16.mxu0 0
    %955 = vmatpush2.bf16.msra.mxu0 0
    %956 = vmatprep.subr.bf16.mxu0 0
    %957 = vmatpush2.bf16.msra.mxu0 0
    %958 = vmatprep.subr.bf16.mxu0 0
    %959 = vmatpush2.bf16.msra.mxu0 0
    %960 = vmatprep.subr.bf16.mxu0 0
    %961 = vmatpush2.bf16.msra.mxu0 0
    %962 = vmatprep.mubr.bf16.mxu0 0
    %963 = vmatmul.mubr.bf16.gmra.mxu0 %v743
    %v964 = vpop.f32.mrf.mxu0
    %v965 = vadd.f32 %v855, %v964
    %v966 = vpop.f32.mrf.mxu0
    %v967 = vpop.f32.mrf.mxu0
    %v968 = vadd.f32 %v858, %v967
    %v969 = vpop.f32.mrf.mxu0
    %970 = vmatprep.mubr.bf16.mxu0 0
    %971 = vmatmul.mubr.bf16.gmra.mxu0 %v744
    %v972 = vpop.f32.mrf.mxu0
    %v973 = vadd.f32 %v863, %v972
    %v974 = vpop.f32.mrf.mxu0
    %v975 = vpop.f32.mrf.mxu0
    %v976 = vadd.f32 %v866, %v975
    %v977 = vpop.f32.mrf.mxu0
    %978 = vmatprep.mubr.bf16.mxu0 0
    %979 = vmatmul.mubr.bf16.gmra.mxu0 %v878
    %v980 = vpop.f32.mrf.mxu0
    %v981 = vadd.f32 %v871, %v980
    %v982 = vpop.f32.mrf.mxu0
    %v983 = vpop.f32.mrf.mxu0
    %v984 = vpop.f32.mrf.mxu0
    %985 = vdwg.mxu0
    %v986 = vld [vmem:[#allocation3] sm:$0xe]
    %s987 = scalar_lea.vmem [#allocation9], 128
    %v988 = vld [vmem:[%s987] sm:$0xf]
    %v989 = vld [vmem:[%s987 + $0x4] sm:$0xf]
    %v990 = vld [vmem:[%s987 + $0x8] sm:$0xf]
    %v991 = vld [vmem:[%s987 + $0xc] sm:$0xf]
    %v992 = vld [vmem:[%s987 + $0x10] sm:$0xf]
    %v993 = vld [vmem:[%s987 + $0x14] sm:$0xf]
    %v994 = vld [vmem:[%s987 + $0x18] sm:$0xf]
    %v995 = vld [vmem:[%s987 + $0x1c] sm:$0xf]
    %v996 = vld [vmem:[%s987 + $0x20] sm:$0xf]
    %v997 = vld [vmem:[%s987 + $0x24] sm:$0xf]
    %v998 = vld [vmem:[%s987 + $0x28] sm:$0xf]
    %v999 = vld [vmem:[%s987 + $0x2c] sm:$0xf]
    %v1000 = vld [vmem:[%s987 + $0x30] sm:$0xf]
    %v1001 = vld [vmem:[%s987 + $0x34] sm:$0xf]
    %v1002 = vld [vmem:[%s987 + $0x38] sm:$0xf]
    %v1003 = vld [vmem:[%s987 + $0x3c] sm:$0xf]
    %v1005 = vunpack.c.l.b16 %v986
    %v1006 = vpack.c.b16 %v739, %v1005
    %v1007 = vrot.slane %v1006, 1
    %v1008 = vrot.slane %v744, 1
    %v1009 = vsel %vm476, %v1007, %v1008
    %v1010 = vrot.slane %v745, 1
    %v1011 = vsel %vm476, %v1008, %v1010
    %v1031 = vunpack.c.l.b16 %v988
    %v1032 = vunpack.c.l.b16 %v989
    %v1033 = vunpack.c.l.b16 %v990
    %v1034 = vunpack.c.l.b16 %v991
    %v1035 = vunpack.c.l.b16 %v992
    %v1036 = vunpack.c.l.b16 %v993
    %v1037 = vunpack.c.l.b16 %v994
    %v1038 = vunpack.c.l.b16 %v995
    %v1039 = vunpack.c.l.b16 %v996
    %v1040 = vunpack.c.l.b16 %v997
    %v1041 = vunpack.c.l.b16 %v998
    %v1042 = vunpack.c.l.b16 %v999
    %v1043 = vunpack.c.l.b16 %v1000
    %v1044 = vunpack.c.l.b16 %v1001
    %v1045 = vunpack.c.l.b16 %v1002
    %v1046 = vunpack.c.l.b16 %v1003
    %v1047 = vpack.c.b16 %v1032, %v1031
    %v1048 = vpack.c.b16 %v1034, %v1033
    %v1049 = vpack.c.b16 %v1036, %v1035
    %v1050 = vpack.c.b16 %v1038, %v1037
    %v1051 = vpack.c.b16 %v1040, %v1039
    %v1052 = vpack.c.b16 %v1042, %v1041
    %v1053 = vpack.c.b16 %v1044, %v1043
    %v1054 = vpack.c.b16 %v1046, %v1045
    %1063 = vmatprep.subr.bf16.mxu0 0
    %1064 = vmatpush1.bf16.msra.mxu0 %v1054
    %1065 = vmatprep.subr.bf16.mxu0 0
    %1066 = vmatpush1.bf16.msra.mxu0 %v1053
    %1067 = vmatprep.subr.bf16.mxu0 0
    %1068 = vmatpush1.bf16.msra.mxu0 %v1052
    %1069 = vmatprep.subr.bf16.mxu0 0
    %1070 = vmatpush1.bf16.msra.mxu0 %v1051
    %1071 = vmatprep.subr.bf16.mxu0 0
    %1072 = vmatpush1.bf16.msra.mxu0 %v1050
    %1073 = vmatprep.subr.bf16.mxu0 0
    %1074 = vmatpush1.bf16.msra.mxu0 %v1049
    %1075 = vmatprep.subr.bf16.mxu0 0
    %1076 = vmatpush1.bf16.msra.mxu0 %v1048
    %1077 = vmatprep.subr.bf16.mxu0 0
    %1078 = vmatpush1.bf16.msra.mxu0 %v1047
    %1079 = vmatprep.subr.bf16.mxu0 0
    %1080 = vmatpush2.bf16.msra.mxu0 0
    %1081 = vmatprep.subr.bf16.mxu0 0
    %1082 = vmatpush2.bf16.msra.mxu0 0
    %1083 = vmatprep.subr.bf16.mxu0 0
    %1084 = vmatpush2.bf16.msra.mxu0 0
    %1085 = vmatprep.subr.bf16.mxu0 0
    %1086 = vmatpush2.bf16.msra.mxu0 0
    %1087 = vmatprep.subr.bf16.mxu0 0
    %1088 = vmatpush2.bf16.msra.mxu0 0
    %1089 = vmatprep.subr.bf16.mxu0 0
    %1090 = vmatpush2.bf16.msra.mxu0 0
    %1091 = vmatprep.subr.bf16.mxu0 0
    %1092 = vmatpush2.bf16.msra.mxu0 0
    %1093 = vmatprep.subr.bf16.mxu0 0
    %1094 = vmatpush2.bf16.msra.mxu0 0
    %1095 = vmatprep.mubr.bf16.mxu0 0
    %1096 = vmatmul.mubr.bf16.gmra.mxu0 %v1009
    %v1097 = vpop.f32.mrf.mxu0
    %v1098 = vadd.f32 0.0, %v1097
    %v1099 = vpop.f32.mrf.mxu0
    %v1100 = vpop.f32.mrf.mxu0
    %v1101 = vadd.f32 0.0, %v1100
    %v1102 = vpop.f32.mrf.mxu0
    %1103 = vmatprep.mubr.bf16.mxu0 0
    %1104 = vmatmul.mubr.bf16.gmra.mxu0 %v1011
    %v1105 = vpop.f32.mrf.mxu0
    %v1106 = vadd.f32 0.0, %v1105
    %v1107 = vpop.f32.mrf.mxu0
    %v1108 = vpop.f32.mrf.mxu0
    %v1109 = vadd.f32 0.0, %v1108
    %v1110 = vpop.f32.mrf.mxu0
    %1111 = vmatprep.mubr.bf16.mxu0 0
    %1112 = vmatmul.mubr.bf16.gmra.mxu0 %v1010
    %v1113 = vpop.f32.mrf.mxu0
    %v1114 = vadd.f32 0.0, %v1113
    %v1115 = vpop.f32.mrf.mxu0
    %v1116 = vpop.f32.mrf.mxu0
    %v1117 = vpop.f32.mrf.mxu0
    %1118 = vdwg.mxu0
    %v1119 = vadd.f32 %v965, %v1098
    %v1120 = vadd.f32 %v968, %v1101
    %v1121 = vadd.f32 %v973, %v1106
    %v1122 = vadd.f32 %v976, %v1109
    %v1123 = vadd.f32 %v981, %v1114
    %v1124 = vld [vmem:[#allocation4] sm:$0xff]
    %v1125 = vld [vmem:[#allocation4 + $0x8] sm:$0xff]
    %v1126 = vadd.f32 %v1119, %v1124
    %v1127 = vadd.f32 %v1120, %v1125
    %1128 = vst [vmem:[#allocation10] sm:$0xff] %v1126
    %1129 = vst [vmem:[#allocation10 + $0x8] sm:$0xff] %v1127
    %v1130 = vld [vmem:[%s113] sm:$0xff]
    %v1131 = vld [vmem:[%s113 + $0x8] sm:$0xff]
    %vm1134 = vcmask 1041408
    %v1135 = vrot.slane %v1130, 6
    %v1136 = vrot.slane %v1131, 6
    %v1137 = vsel %vm1134, %v1135, %v1136
    %v1141 = vadd.f32 %v1121, %v1135
    %v1142 = vadd.f32 %v1122, %v1137
    %v1143 = vadd.f32 %v1123, %v1136
    %s1144 = scalar_lea.vmem [#allocation10], 16
    %1145 = vst [vmem:[%s1144 - $0x2] sm:$0xfc] %v1141
    %1146 = vst [vmem:[%s1144 + $0x6] sm:$0xff] %v1142
    %1147 = vst [vmem:[%s1144 + $0xe] sm:$0x3] %v1143
    // Predicated region
    $region26: #{tpu_custom_call.1} parent=1 // pred_check
      _
    $region27: #{tpu_custom_call.1} parent=1 // pred_check_branch
      %1149 = sbr.rel (0) target = $region29
    $region28: #{tpu_custom_call.1} parent=1 // pred_region
      %s1151 = ssub.s32 512, 512
      %1152 = vsyncadd [#allocation6], %s1151
      %s1153 = sshll.u32 [#allocation10], 4
      %s1154 = int_to_ptr.vmem [resolvable:$true] %s1153
      %1159 = dma.vmem_to_hbm [thread:$0]  %s1154, 512, %s3, [#allocation6], 128, 128, 8
    $region29: #{tpu_custom_call.1} parent=1 // pred_fallthru
      _
    // Predicated region
    $region30: #{tpu_custom_call.1} parent=1 // pred_check
      _
    $region31: #{tpu_custom_call.1} parent=1 // pred_check_branch
      %1161 = sbr.rel (0) target = $region33
    $region32: #{tpu_custom_call.1} parent=1 // pred_region
      %1162 = dma.done [#allocation6], 512
    $region33: #{tpu_custom_call.1} parent=1 // pred_fallthru
      _
    %1163 = vsyncpa [#allocation5], 1
    %1164 = vsyncpa [#allocation8], 1
    %1165 = vsyncpa [#allocation6], 1

</llo_original>
